<compile_context>
chip_gen: v6e
topology: v6e:2x2x1
jax: 0.10.0
libtpu: 0.0.40
codegen_flags: <defaults>
</compile_context>

<pallas_src>
import functools

import jax
import jax.numpy as jnp
import numpy as np
from jax.experimental import pallas as pl
from jax.experimental.pallas import tpu as pltpu

SCALING_FACTOR = 1.8    # args.scaling_factor (typical GNAE value)
EPS = 1e-12             # torch.nn.functional.normalize default eps
LANE = 128


def _round_up(x, m):
    return ((x + m - 1) // m) * m


def _pad2(a, rows, cols):
    return jnp.pad(a, ((0, rows - a.shape[0]), (0, cols - a.shape[1])))


def _vmem_capacity_bytes():
    try:
        return int(pltpu.get_tpu_info().vmem_capacity_bytes)
    except Exception:
        return 64 * 1024 * 1024     # conservative fallback (v7x per-TC VMEM)


def _vmem_limit(bytes_needed, cap):
    limit = max(int(bytes_needed) + (8 << 20), 32 << 20)
    return int(min(limit, cap - (2 << 20)))


# ---------------------------------------------------------------------------
# Pass 1: h = normalize(x @ W1 + b1, p=2, dim=1) * scaling_factor  (row-tiled)
# ---------------------------------------------------------------------------
def _hidden_kernel(x_ref, w1_ref, b1_ref, h_ref, *, scaling_factor):
    h = jnp.dot(x_ref[...], w1_ref[...],
                preferred_element_type=jnp.float32) + b1_ref[...]
    ssq = jnp.sum(h * h, axis=1, keepdims=True)
    # max(norm, eps) == sqrt(max(ssq, eps^2)); rsqrt runs on the EUP and the
    # scaling factor folds into the same multiply (no divide on the VPU).
    inv = jax.lax.rsqrt(jnp.maximum(ssq, EPS * EPS)) * scaling_factor
    h_ref[...] = (h * inv).astype(h_ref.dtype)


# ---------------------------------------------------------------------------
# Pass 2: z = (A_hat @ h) @ W2 + b2   (block-sparse, int8 adjacency stream)
# ---------------------------------------------------------------------------
def _prop_kernel(ids_ref, cnt_ref, adj_ref, h_ref, w2_ref, b2_ref,
                 o_ref, acc_ref, *, max_nnz, tile_k, h_resident):
    i = pl.program_id(0)
    k = pl.program_id(1)

    @pl.when(k == 0)
    def _():
        acc_ref[...] = jnp.zeros_like(acc_ref)

    # Only multiply adjacency blocks that actually contain nonzeros; padded
    # k-steps reuse the previous block index so their DMAs are skipped too.
    @pl.when(k < cnt_ref[i])
    def _():
        # int8 -> bf16 dequant (the per-tensor scale is folded into h).
        adj_blk = adj_ref[...].astype(jnp.bfloat16)
        if h_resident:
            col = ids_ref[i * max_nnz + k]
            start = pl.multiple_of(col * tile_k, tile_k)
            h_blk = h_ref[pl.ds(start, tile_k), :]
        else:
            h_blk = h_ref[...]
        acc_ref[...] += jnp.dot(adj_blk, h_blk,
                                preferred_element_type=jnp.float32)

    @pl.when(k == pl.num_programs(1) - 1)
    def _():
        out = jnp.dot(acc_ref[...], w2_ref[...],
                      preferred_element_type=jnp.float32) + b2_ref[...]
        o_ref[...] = out.astype(o_ref.dtype)


def encoder_forward(x, w1_t, b1, w2_t, b2, adj_hat, *,
                    scaling_factor=SCALING_FACTOR,
                    tile_m=512, tile_k=512, h_resident=None):
    """x: [N, Fin], w1_t: [Fin, H], b1: [1, H], w2_t: [H, Fout], b2: [1, Fout],
    adj_hat: [N, N] dense GCN-normalized adjacency.  Returns [N, Fout] f32.
    tile_m / tile_k tile the rows / contraction columns of adj_hat.
    h_resident: None = auto (VMEM-budget gated), True/False to force."""
    assert tile_m % 32 == 0 and tile_k % LANE == 0   # int8 tiles need (32,128)
    n, fin = x.shape
    hdim = w1_t.shape[1]
    fout = w2_t.shape[1]

    fin_p = _round_up(fin, LANE)
    h_p = _round_up(hdim, LANE)
    fout_p = _round_up(fout, LANE)
    # Independent row / column padding (no lcm blow-up of the N^2 operand).
    n_pm = _round_up(n, tile_m)        # adjacency / output rows
    n_pk = _round_up(n, tile_k)        # adjacency cols == hidden rows
    ni, nk = n_pm // tile_m, n_pk // tile_k

    vmem_cap = _vmem_capacity_bytes()

    # ---- operands: bf16 matmul inputs, f32 biases / output weights --------
    x_p = _pad2(x.astype(jnp.bfloat16), n_pk, fin_p)
    w1_p = _pad2(w1_t.astype(jnp.bfloat16), fin_p, h_p)
    b1_p = _pad2(b1.astype(jnp.float32), 1, h_p)
    w2_p = _pad2(w2_t.astype(jnp.float32), h_p, fout_p)
    b2_p = _pad2(b2.astype(jnp.float32), 1, fout_p)

    # ---- int8 adjacency with a per-tensor scale (pass 2 is HBM-bound) -----
    adj_p = _pad2(adj_hat.astype(jnp.float32), n_pm, n_pk)
    amax = jnp.maximum(jnp.max(jnp.abs(adj_p)), 1e-30)
    adj_scale = amax / 127.0
    adj_q = jnp.clip(jnp.round(adj_p / adj_scale), -127.0, 127.0
                     ).astype(jnp.int8)

    # ---- block-sparsity metadata, computed ON DEVICE -----------------------
    nzb = jnp.any(adj_q.reshape(ni, tile_m, nk, tile_k) != 0, axis=(1, 3))
    cnt = jnp.sum(nzb, axis=1).astype(jnp.int32)                    # [ni]
    order = jnp.argsort(jnp.logical_not(nzb).astype(jnp.int32),
                        axis=1, stable=True).astype(jnp.int32)      # [ni, nk]
    last = jnp.take_along_axis(order, jnp.maximum(cnt - 1, 0)[:, None], axis=1)
    kk = jnp.arange(nk, dtype=jnp.int32)[None, :]
    # Pad with the LAST valid block id -> padded steps issue no new DMAs.
    ids_padded = jnp.where(kk < cnt[:, None], order, last)          # [ni, nk]
    # Only the tiny per-row-block counts cross to host (static grid extent);
    # the N^2 adjacency never leaves the device.
    cnt_host = np.asarray(jax.device_get(cnt))
    max_nnz = max(int(cnt_host.max()), 1)
    blk_ids = ids_padded[:, :max_nnz].reshape(-1)   # flat 1-D SMEM, no padding
    blk_cnt = cnt

    # ---- pass 1: hidden features (bf16), row-tiled ------------------------
    tile_n1 = tile_k                    # divides n_pk by construction
    p1_bytes = 2 * (tile_n1 * fin_p * 2 + fin_p * h_p * 2
                    + 8 * h_p * 4 + tile_n1 * h_p * 2)
    h = pl.pallas_call(
        functools.partial(_hidden_kernel, scaling_factor=scaling_factor),
        out_shape=jax.ShapeDtypeStruct((n_pk, h_p), jnp.bfloat16),
        grid=(n_pk // tile_n1,),
        in_specs=[pl.BlockSpec((tile_n1, fin_p), lambda i: (i, 0)),
                  pl.BlockSpec((fin_p, h_p), lambda i: (0, 0)),
                  pl.BlockSpec((1, h_p), lambda i: (0, 0))],
        out_specs=pl.BlockSpec((tile_n1, h_p), lambda i: (i, 0)),
        compiler_params=pltpu.CompilerParams(
            dimension_semantics=("parallel",),
            vmem_limit_bytes=_vmem_limit(p1_bytes, vmem_cap)),
        cost_estimate=pl.CostEstimate(
            flops=2 * n_pk * fin_p * h_p,
            transcendentals=n_pk,
            bytes_accessed=2 * (n_pk * fin_p + fin_p * h_p + n_pk * h_p)),
    )(x_p, w1_p, b1_p)

    # Fold the int8 dequant scale into h (scalar): A@h ~= A_q @ (scale * h).
    h = (h.astype(jnp.float32) * adj_scale).astype(jnp.bfloat16)

    # ---- pass 2: block-sparse A_hat @ h with fused Linear2 epilogue -------
    def p2_bytes(resident):
        return (2 * tile_m * tile_k * 1                       # adj int8 x2
                + 2 * (n_pk if resident else tile_k) * h_p * 2  # h bf16 x2
                + 2 * h_p * fout_p * 4 + 2 * 8 * fout_p * 4     # w2 / b2
                + 2 * tile_m * fout_p * 4                       # out x2
                + tile_m * h_p * 4)                             # acc scratch

    if h_resident is None:
        h_resident = p2_bytes(True) <= vmem_cap // 2

    if h_resident:
        # Whole hidden matrix stays in VMEM; DMA'd once (constant block idx).
        h_spec = pl.BlockSpec((n_pk, h_p),
                              lambda i, k, ids_ref, cnt_ref: (0, 0))
    else:
        h_spec = pl.BlockSpec(
            (tile_k, h_p),
            lambda i, k, ids_ref, cnt_ref: (ids_ref[i * max_nnz + k], 0))

    grid_spec = pltpu.PrefetchScalarGridSpec(
        num_scalar_prefetch=2,
        grid=(ni, max_nnz),                       # reduction (k) axis last
        in_specs=[
            pl.BlockSpec((tile_m, tile_k),
                         lambda i, k, ids_ref, cnt_ref:
                         (i, ids_ref[i * max_nnz + k])),
            h_spec,
            pl.BlockSpec((h_p, fout_p),
                         lambda i, k, ids_ref, cnt_ref: (0, 0)),
            pl.BlockSpec((1, fout_p),
                         lambda i, k, ids_ref, cnt_ref: (0, 0)),
        ],
        out_specs=pl.BlockSpec((tile_m, fout_p),
                               lambda i, k, ids_ref, cnt_ref: (i, 0)),
        scratch_shapes=[pltpu.VMEM((tile_m, h_p), jnp.float32)],
    )
    out_p = pl.pallas_call(
        functools.partial(_prop_kernel, max_nnz=max_nnz, tile_k=tile_k,
                          h_resident=bool(h_resident)),
        out_shape=jax.ShapeDtypeStruct((n_pm, fout_p), jnp.float32),
        grid_spec=grid_spec,
        compiler_params=pltpu.CompilerParams(
            dimension_semantics=("parallel", "arbitrary"),
            vmem_limit_bytes=_vmem_limit(p2_bytes(h_resident), vmem_cap)),
        cost_estimate=pl.CostEstimate(
            flops=2 * n_pm * n_pk * h_p + 2 * n_pm * h_p * fout_p,
            transcendentals=0,
            bytes_accessed=(n_pm * n_pk
                            + 2 * n_pk * h_p * (1 if h_resident else ni)
                            + 4 * h_p * fout_p + 4 * n_pm * fout_p)),
    )(blk_ids, blk_cnt, adj_q, h, w2_p, b2_p)

    # Padded rows contain b2 only; sliced off before anyone can observe them.
    return out_p[:n, :fout]


def gcn_norm_dense(edge_index, num_nodes):
    """Dense A_hat = D^{-1/2} (A + I) D^{-1/2}.  For unweighted edge_index this
    matches PyG gcn_norm + add_remaining_self_loops(fill=1): duplicate non-self
    edges accumulate, and every node ends up with exactly one unit self-loop
    (existing unit self-loops are preserved as weight 1)."""
    src, dst = edge_index[0], edge_index[1]
    w = jnp.where(src != dst, 1.0, 0.0).astype(jnp.float32)
    adj = jnp.zeros((num_nodes, num_nodes), jnp.float32).at[dst, src].add(w)
    adj = adj + jnp.eye(num_nodes, dtype=jnp.float32)
    deg = jnp.sum(adj, axis=1)
    dinv = jnp.where(deg > 0, jax.lax.rsqrt(deg), 0.0)
    return adj * dinv[:, None] * dinv[None, :]


if __name__ == "__main__":
    key = jax.random.PRNGKey(0)
    k_x, k_e, k_w1, k_b1, k_w2, k_b2 = jax.random.split(key, 6)

    # Small, module-consistent shapes; tiles below give a multi-block grid
    # (4 row blocks x 2 column blocks).
    num_nodes = 200
    in_channels = 8
    hidden_channels = 32
    out_channels = 16
    num_edges = 600

    x = jax.random.normal(k_x, (num_nodes, in_channels), jnp.float32)
    edge_index = jax.random.randint(k_e, (2, num_edges), 0, num_nodes)

    def linear_init(kw, kb, fan_in, fan_out):
        bound = 1.0 / jnp.sqrt(jnp.float32(fan_in))
        w = jax.random.uniform(kw, (fan_out, fan_in), jnp.float32,
                               -bound, bound)          # torch layout [out, in]
        b = jax.random.uniform(kb, (fan_out,), jnp.float32, -bound, bound)
        return w, b

    w1, b1 = linear_init(k_w1, k_b1, in_channels, hidden_channels)
    w2, b2 = linear_init(k_w2, k_b2, hidden_channels, out_channels)

    w1_t = w1.T                       # [Fin, H]
    w2_t = w2.T                       # [H, Fout]
    b1_r = b1.reshape(1, -1)          # [1, H]
    b2_r = b2.reshape(1, -1)          # [1, Fout]
    adj_hat = gcn_norm_dense(edge_index, num_nodes)

    # Exercise both pass-2 variants (VMEM-resident hidden and tiled hidden);
    # production defaults are tile_m=512, tile_k=512 with auto residency.
    out_res = encoder_forward(x, w1_t, b1_r, w2_t, b2_r, adj_hat,
                              tile_m=64, tile_k=128, h_resident=True)
    out_tile = encoder_forward(x, w1_t, b1_r, w2_t, b2_r, adj_hat,
                               tile_m=64, tile_k=128, h_resident=False)
    out_res = jax.block_until_ready(out_res)
    out_tile = jax.block_until_ready(out_tile)

    # Pure-JAX f32 reference (kernel uses int8 adj / bf16 h -> relaxed tol).
    h_ref = x @ w1_t + b1_r
    h_ref = h_ref / jnp.maximum(
        jnp.linalg.norm(h_ref, axis=1, keepdims=True), EPS) * SCALING_FACTOR
    ref = (adj_hat @ h_ref) @ w2_t + b2_r

    for out in (out_res, out_tile):
        assert out.shape == (num_nodes, out_channels)
        err = float(jnp.max(jnp.abs(out - ref)))
        assert jnp.allclose(out, ref, atol=5e-2, rtol=5e-2), (
            f"mismatch vs reference, max abs err {err}")
    assert jnp.allclose(out_res, out_tile, atol=1e-3, rtol=1e-3), (
        "resident-h and tiled-h paths disagree")

    # TODO(synk): the VGNAE encoder branch computes an unused x_ path; only the
    # returned GNAE-style embedding z = encoder(x, edge_index) is implemented.
    print("KERNEL_OK")
</pallas_src>

<mosaic_0001>
module attributes {stable_mosaic.version = 11 : i64} {
  func.func @_hidden_kernel(%arg0: i32, %arg1: memref<128x128xbf16, #tpu.memory_space<vmem>>, %arg2: memref<128x128xbf16, #tpu.memory_space<vmem>>, %arg3: memref<1x128xf32, #tpu.memory_space<vmem>>, %arg4: memref<128x128xbf16, #tpu.memory_space<vmem>>) attributes {dimension_semantics = [#tpu.dimension_semantics<parallel>], iteration_bounds = array<i64: 2>, scalar_prefetch = 0 : i64, scratch_operands = 0 : i64, tpu.core_type = #tpu.core_type<tc>, window_params = [{transform_indices = @transform_0, window_bounds = array<i64: 128, 128>}, {pipeline_mode = #tpu.pipeline_mode<synchronous>, transform_indices = @transform_1, window_bounds = array<i64: 128, 128>}, {pipeline_mode = #tpu.pipeline_mode<synchronous>, transform_indices = @transform_2, window_bounds = array<i64: 1, 128>}, {transform_indices = @transform_3, window_bounds = array<i64: 128, 128>}]} {
    %c0 = arith.constant 0 : index
    %c0_0 = arith.constant 0 : index
    %0 = vector.load %arg1[%c0, %c0_0] : memref<128x128xbf16, #tpu.memory_space<vmem>>, vector<128x128xbf16>
    %c0_1 = arith.constant 0 : index
    %c0_2 = arith.constant 0 : index
    %1 = vector.load %arg2[%c0_1, %c0_2] : memref<128x128xbf16, #tpu.memory_space<vmem>>, vector<128x128xbf16>
    %cst = arith.constant dense<0.000000e+00> : vector<128x128xf32>
    %2 = tpu.matmul %0, %1, %cst {dimension_numbers = #tpu.dot_dimension_numbers<[1], [0], [0], [1], [0, 0, 1, 1], [], []>} : vector<128x128xbf16>, vector<128x128xbf16>, vector<128x128xf32> -> vector<128x128xf32>
    %c0_3 = arith.constant 0 : index
    %c0_4 = arith.constant 0 : index
    %3 = vector.load %arg3[%c0_3, %c0_4] : memref<1x128xf32, #tpu.memory_space<vmem>>, vector<1x128xf32>
    %4 = vector.broadcast %3 : vector<1x128xf32> to vector<128x128xf32>
    %5 = arith.addf %2, %4 : vector<128x128xf32>
    %6 = arith.mulf %5, %5 : vector<128x128xf32>
    %cst_5 = arith.constant dense<0.000000e+00> : vector<128xf32>
    %7 = vector.multi_reduction <add>, %6, %cst_5 [1] : vector<128x128xf32> to vector<128xf32>
    %8 = vector.shape_cast %7 : vector<128xf32> to vector<128x1xf32>
    %cst_6 = arith.constant 1.000000e-24 : f32
    %9 = vector.broadcast %cst_6 : f32 to vector<128x1xf32>
    %10 = arith.maximumf %8, %9 : vector<128x1xf32>
    %11 = math.rsqrt %10 : vector<128x1xf32>
    %cst_7 = arith.constant 1.800000e+00 : f32
    %12 = vector.broadcast %cst_7 : f32 to vector<128x1xf32>
    %13 = arith.mulf %11, %12 : vector<128x1xf32>
    %14 = vector.broadcast %13 : vector<128x1xf32> to vector<128x128xf32>
    %15 = arith.mulf %5, %14 : vector<128x128xf32>
    %16 = arith.truncf %15 : vector<128x128xf32> to vector<128x128xbf16>
    %c0_8 = arith.constant 0 : index
    %c0_9 = arith.constant 0 : index
    %17 = vector.load %arg4[%c0_8, %c0_9] : memref<128x128xbf16, #tpu.memory_space<vmem>>, vector<128x128xbf16>
    tpu.vector_store %arg4[%c0_8, %c0_9], %16 {strides = array<i32>} : memref<128x128xbf16, #tpu.memory_space<vmem>>, vector<128x128xbf16>,
    return
  }
  func.func @transform_0(%arg0: i32) -> (i32, i32) {
    %c0_i32 = arith.constant 0 : i32
    %c0_i32_0 = arith.constant 0 : i32
    return %arg0, %c0_i32 : i32, i32
  }
  func.func @transform_1(%arg0: i32) -> (i32, i32) {
    %c0_i32 = arith.constant 0 : i32
    %c0_i32_0 = arith.constant 0 : i32
    %c0_i32_1 = arith.constant 0 : i32
    return %c0_i32, %c0_i32_0 : i32, i32
  }
  func.func @transform_2(%arg0: i32) -> (i32, i32) {
    %c0_i32 = arith.constant 0 : i32
    %c0_i32_0 = arith.constant 0 : i32
    %c0_i32_1 = arith.constant 0 : i32
    return %c0_i32, %c0_i32_0 : i32, i32
  }
  func.func @transform_3(%arg0: i32) -> (i32, i32) {
    %c0_i32 = arith.constant 0 : i32
    %c0_i32_0 = arith.constant 0 : i32
    return %arg0, %c0_i32 : i32, i32
  }
}

</mosaic_0001>

<llo_original>
// kernel: tpu_custom_call.1
$region0: #{tpu_custom_call.1}
  #allocation0 [shape = 'u32[]', space=smem, size = 0x4, offset = 0x4, fixed_abs, tag = 'smem constant byte address 0x4 - core index']
  #allocation1 [shape = 'u32[144,128]{1,0:T(1,128)}', space=vmem, size = 0x12000, scoped, tag = 'internal scratch']
  %s0 = inlined_call_operand.hbm [shape: bf16[256,128], index: 0, kind: input, shape index: {}]
  %s1 = inlined_call_operand.hbm [shape: bf16[128,128], index: 1, kind: input, shape index: {}]
  %s2 = inlined_call_operand.vmem [shape: f32[1,128], index: 2, kind: input, shape index: {}]
  %s3 = inlined_call_operand.hbm [shape: bf16[256,128], index: 3, kind: output, shape index: {}]
  %s4 = sld [smem:[#allocation0]]
  $region53: #{tpu_custom_call.1} parent=0
    _
  %s6 = ssub.s32 1, %s4
  %s7 = scalar_select 0, %s6, %s4
  $region1: #{tpu_custom_call.1} parent=0
    #allocation2 [shape = 'u8[65536]{0}', space=vmem, size = 0x10000, scoped, tag = 'input window, operand 0']
    #allocation3 [shape = 's32[2]{0}', space=sflag, size = 0x8, scoped, tag = 'scoped memory for tpu_custom_call.1']
    #allocation4 [shape = 's32[2]{0}', space=sflag, size = 0x8, scoped, tag = 'scoped memory for tpu_custom_call.1']
    #allocation5 [shape = 'u8[32768]{0}', space=vmem, size = 0x8000, scoped, tag = 'input window, operand 1, single buffered']
    #allocation6 [shape = 's32[1]{0}', space=sflag, size = 0x4, scoped, tag = 'scoped memory for tpu_custom_call.1']
    #allocation7 [shape = 'u8[65536]{0}', space=vmem, size = 0x10000, scoped, tag = 'output window, operand 0']
    %8 = vsyncpa [#allocation3], 0
    %s9 = scalar_lea.sflag [#allocation3], 1
    %10 = vsyncpa %s9, 0
    %11 = vsyncpa [#allocation6], 0
    %12 = vsyncpa [#allocation4], 0
    %s13 = scalar_lea.sflag [#allocation4], 1
    %14 = vsyncpa %s13, 0
    loop: start=0, step=1, limit=4
    $region2: #{tpu_custom_call.1} parent=1 // loop_pre_header
      _
    $region3: #{tpu_custom_call.1} parent=1 // loop_header
      %s16 = sphi 0, %s20
      %p17 = scmp.ge.s32.totalorder %s16, 4
      %s26 = sphi 0, %s28
      %s29 = sphi 0, %s26
      %s30 = sphi 0, %s29
      %s46 = sphi 0, %s30
      %s50 = sphi 0, %s50
      %s52 = sphi 0, %s50
      %s53 = sphi 0, %s52
      %s67 = sphi 0, %s53
      %s71 = sphi 0, %s71
      %s73 = sphi 0, %s71
      %s74 = sphi 0, %s73
      %s88 = sphi 0, %s74
      %s94 = sphi 0, %s96
      %s97 = sphi 0, %s94
      %s98 = sphi 0, %s97
      %s114 = sphi 0, %s98
    $region4: #{tpu_custom_call.1} parent=1 // loop_header_branch
      %19 = sbr.rel (%p17) target = $region8
    $region5: #{tpu_custom_call.1} parent=1 // loop_body
      %s21 = ssub.s32 %s16, 1
      %s22 = ssub.s32 %s16, 2
      %s23 = sadd.s32 %s16, 1
      %s24 = ssub.s32 %s16, %s23
      %p25 = scmp.eq.s32.totalorder %s24, 0
      %s27 = sadd.s32 %s26, 1
      %s28 = scalar_select %p25, %s26, %s27
      %p31 = pneg %p25
      %p32 = scmp.eq.s32.totalorder %s16, 1
      %p33 = por %p31, %p32
      %p34 = scmp.ne.s32.totalorder %s26, %s29
      %p35 = scmp.eq.s32.totalorder %s16, 0
      %p36 = por %p34, %p35
      %p37 = scmp.ne.s32.totalorder %s26, %s29
      %p38 = scmp.eq.s32.totalorder %s21, 1
      %p39 = por %p37, %p38
      %p40 = scmp.ne.s32.totalorder %s29, %s30
      %p41 = scmp.eq.s32.totalorder %s21, 0
      %p42 = por %p40, %p41
      %p43 = scmp.ne.s32.totalorder %s29, %s30
      %p44 = scmp.eq.s32.totalorder %s22, 1
      %p45 = por %p43, %p44
      %p47 = scmp.ne.s32.totalorder %s30, %s46
      %p48 = scmp.eq.s32.totalorder %s22, 0
      %p49 = por %p47, %p48
      %s51 = sadd.s32 %s50, 1
      %p54 = scmp.eq.s32.totalorder %s16, 1
      %p55 = scmp.ne.s32.totalorder %s50, %s52
      %p56 = scmp.eq.s32.totalorder %s16, 0
      %p57 = por %p55, %p56
      %p58 = scmp.ne.s32.totalorder %s50, %s52
      %p59 = scmp.eq.s32.totalorder %s21, 1
      %p60 = por %p58, %p59
      %p61 = scmp.ne.s32.totalorder %s52, %s53
      %p62 = scmp.eq.s32.totalorder %s21, 0
      %p63 = por %p61, %p62
      %p64 = scmp.ne.s32.totalorder %s52, %s53
      %p65 = scmp.eq.s32.totalorder %s22, 1
      %p66 = por %p64, %p65
      %p68 = scmp.ne.s32.totalorder %s53, %s67
      %p69 = scmp.eq.s32.totalorder %s22, 0
      %p70 = por %p68, %p69
      %s72 = sadd.s32 %s71, 1
      %p75 = scmp.eq.s32.totalorder %s16, 1
      %p76 = scmp.ne.s32.totalorder %s71, %s73
      %p77 = scmp.eq.s32.totalorder %s16, 0
      %p78 = por %p76, %p77
      %p79 = scmp.ne.s32.totalorder %s71, %s73
      %p80 = scmp.eq.s32.totalorder %s21, 1
      %p81 = por %p79, %p80
      %p82 = scmp.ne.s32.totalorder %s73, %s74
      %p83 = scmp.eq.s32.totalorder %s21, 0
      %p84 = por %p82, %p83
      %p85 = scmp.ne.s32.totalorder %s73, %s74
      %p86 = scmp.eq.s32.totalorder %s22, 1
      %p87 = por %p85, %p86
      %p89 = scmp.ne.s32.totalorder %s74, %s88
      %p90 = scmp.eq.s32.totalorder %s22, 0
      %p91 = por %p89, %p90
      %s92 = ssub.s32 %s16, %s23
      %p93 = scmp.eq.s32.totalorder %s92, 0
      %s95 = sadd.s32 %s94, 1
      %s96 = scalar_select %p93, %s94, %s95
      %p99 = pneg %p93
      %p100 = scmp.eq.s32.totalorder %s16, 1
      %p101 = por %p99, %p100
      %p102 = scmp.ne.s32.totalorder %s94, %s97
      %p103 = scmp.eq.s32.totalorder %s16, 0
      %p104 = por %p102, %p103
      %p105 = scmp.ne.s32.totalorder %s94, %s97
      %p106 = scmp.eq.s32.totalorder %s21, 1
      %p107 = por %p105, %p106
      %p108 = scmp.ne.s32.totalorder %s97, %s98
      %p109 = scmp.eq.s32.totalorder %s21, 0
      %p110 = por %p108, %p109
      %p111 = scmp.ne.s32.totalorder %s97, %s98
      %p112 = scmp.eq.s32.totalorder %s22, 1
      %p113 = por %p111, %p112
      %p115 = scmp.ne.s32.totalorder %s98, %s114
      %p116 = scmp.eq.s32.totalorder %s22, 0
      %p117 = por %p115, %p116
      %p118 = scmp.le.s32.totalorder 1, %s16
      %p119 = scmp.lt.s32.totalorder %s16, 3
      %p120 = pnand %p118, %p119
      %p121 = pneg %p120
      // Predicated region
      $region9: #{tpu_custom_call.1} parent=5 // pred_check
        _
      $region10: #{tpu_custom_call.1} parent=5 // pred_check_branch
        %123 = sbr.rel (%p120) target = $region12
      $region11: #{tpu_custom_call.1} parent=5 // pred_region
        %s124 = ssub.s32 %s16, 1
        // Predicated region
        $region13: #{tpu_custom_call.1} parent=11 // pred_check
          %p125 = pneg %p63
        $region14: #{tpu_custom_call.1} parent=11 // pred_check_branch
          %127 = sbr.rel (%p125) target = $region16
        $region15: #{tpu_custom_call.1} parent=11 // pred_region
          %s129 = ssub.s32 1024, 1024
          %130 = vsyncadd [#allocation6], %s129
          %s131 = sshll.u32 [#allocation5], 4
          %s132 = int_to_ptr.vmem [resolvable:$true] %s131
          %137 = dma.hbm_to_vmem [thread:$0]  %s1, 1024, %s132, [#allocation6], 64, 64, 4
        $region16: #{tpu_custom_call.1} parent=11 // pred_fallthru
          _
        // Predicated region
        $region17: #{tpu_custom_call.1} parent=11 // pred_check
          %p138 = pneg %p84
        $region18: #{tpu_custom_call.1} parent=11 // pred_check_branch
          %140 = sbr.rel (%p138) target = $region20
        $region19: #{tpu_custom_call.1} parent=11 // pred_region
          _
        $region20: #{tpu_custom_call.1} parent=11 // pred_fallthru
          _
      $region12: #{tpu_custom_call.1} parent=5 // pred_fallthru
        _
      %p141 = scmp.lt.s32.totalorder %s16, 2
      // Predicated region
      $region21: #{tpu_custom_call.1} parent=5 // pred_check
        %p142 = pneg %p141
      $region22: #{tpu_custom_call.1} parent=5 // pred_check_branch
        %144 = sbr.rel (%p142) target = $region24
      $region23: #{tpu_custom_call.1} parent=5 // pred_region
        // Predicated region
        $region25: #{tpu_custom_call.1} parent=23 // pred_check
          %p145 = pneg %p36
        $region26: #{tpu_custom_call.1} parent=23 // pred_check_branch
          %147 = sbr.rel (%p145) target = $region28
        $region27: #{tpu_custom_call.1} parent=23 // pred_region
          %s148 = sand.u32 %s26, 1
          %s149 = scalar_lea.sflag [#allocation3], %s148
          %s150 = sand.u32 %s26, 1
          %s151 = smul.addr %s150, 64
          %s152 = scalar_lea.vmem [#allocation2], %s151
          %s153 = smul.u32 16, %s16
          %s155 = ssub.s32 1024, 1024
          %156 = vsyncadd %s149, %s155
          %s157 = smul.addr %s153, 64
          %s158 = scalar_lea.hbm %s0, %s157
          %s159 = sshll.u32 %s152, 4
          %s160 = int_to_ptr.vmem [resolvable:$true] %s159
          %165 = dma.hbm_to_vmem [thread:$0]  %s158, 1024, %s160, %s149, 64, 64, 4
        $region28: #{tpu_custom_call.1} parent=23 // pred_fallthru
          _
      $region24: #{tpu_custom_call.1} parent=5 // pred_fallthru
        _
      %p166 = scmp.le.s32.totalorder 1, %s16
      %p167 = scmp.lt.s32.totalorder %s16, 3
      %p168 = pnand %p166, %p167
      %p169 = pneg %p168
      // Predicated region
      $region29: #{tpu_custom_call.1} parent=5 // pred_check
        _
      $region30: #{tpu_custom_call.1} parent=5 // pred_check_branch
        %171 = sbr.rel (%p168) target = $region32
      $region31: #{tpu_custom_call.1} parent=5 // pred_region
        %s172 = ssub.s32 %s16, 1
        %s173 = sand.u32 %s29, 1
        %s174 = scalar_lea.sflag [#allocation3], %s173
        %s175 = sand.u32 %s29, 1
        %s176 = smul.addr %s175, 64
        %s177 = scalar_lea.vmem [#allocation2], %s176
        // Predicated region
        $region33: #{tpu_custom_call.1} parent=31 // pred_check
          %p178 = pneg %p42
        $region34: #{tpu_custom_call.1} parent=31 // pred_check_branch
          %180 = sbr.rel (%p178) target = $region36
        $region35: #{tpu_custom_call.1} parent=31 // pred_region
          %181 = dma.done %s174, 1024
        $region36: #{tpu_custom_call.1} parent=31 // pred_fallthru
          _
        // Predicated region
        $region37: #{tpu_custom_call.1} parent=31 // pred_check
          %p182 = pneg %p63
        $region38: #{tpu_custom_call.1} parent=31 // pred_check_branch
          %184 = sbr.rel (%p182) target = $region40
        $region39: #{tpu_custom_call.1} parent=31 // pred_region
          %185 = dma.done [#allocation6], 1024
        $region40: #{tpu_custom_call.1} parent=31 // pred_fallthru
          _
        %s186 = sand.u32 %s29, 1
        %s187 = scalar_lea.sflag [#allocation3], %s186
        %s188 = sand.u32 %s29, 1
        %s189 = smul.addr %s188, 64
        %s190 = scalar_lea.vmem [#allocation2], %s189
        %p191 = pneg %p42
        %p192 = pneg %p39
        %p193 = pneg %p63
        %p194 = pneg %p60
        %p195 = pneg %p84
        %p196 = pneg %p81
        %p197 = pneg %p110
        %p198 = pneg %p107
        %s199 = sand.u32 %s97, 1
        %s200 = scalar_lea.sflag [#allocation4], %s199
        %s201 = sand.u32 %s97, 1
        %s202 = smul.addr %s201, 64
        %s203 = scalar_lea.vmem [#allocation7], %s202
        %s204 = smul.u32 16, %s21
        %s205 = smul.u32 16, %s21
        %v207 = vld [vmem:[%s177] sm:$0xf]
        %v208 = vld [vmem:[%s177 + $0x4] sm:$0xf]
        %v209 = vld [vmem:[%s177 + $0x8] sm:$0xf]
        %v210 = vld [vmem:[%s177 + $0xc] sm:$0xf]
        %v211 = vld [vmem:[%s177 + $0x10] sm:$0xf]
        %v212 = vld [vmem:[%s177 + $0x14] sm:$0xf]
        %v213 = vld [vmem:[%s177 + $0x18] sm:$0xf]
        %v214 = vld [vmem:[%s177 + $0x1c] sm:$0xf]
        %v215 = vld [vmem:[%s177 + $0x20] sm:$0xf]
        %v216 = vld [vmem:[%s177 + $0x24] sm:$0xf]
        %v217 = vld [vmem:[%s177 + $0x28] sm:$0xf]
        %v218 = vld [vmem:[%s177 + $0x2c] sm:$0xf]
        %v219 = vld [vmem:[%s177 + $0x30] sm:$0xf]
        %v220 = vld [vmem:[%s177 + $0x34] sm:$0xf]
        %v221 = vld [vmem:[%s177 + $0x38] sm:$0xf]
        %v222 = vld [vmem:[%s177 + $0x3c] sm:$0xf]
        %v223 = vld [vmem:[#allocation5] sm:$0xf]
        %v224 = vld [vmem:[#allocation5 + $0x4] sm:$0xf]
        %v225 = vld [vmem:[#allocation5 + $0x8] sm:$0xf]
        %v226 = vld [vmem:[#allocation5 + $0xc] sm:$0xf]
        %v227 = vld [vmem:[#allocation5 + $0x10] sm:$0xf]
        %v228 = vld [vmem:[#allocation5 + $0x14] sm:$0xf]
        %v229 = vld [vmem:[#allocation5 + $0x18] sm:$0xf]
        %v230 = vld [vmem:[#allocation5 + $0x1c] sm:$0xf]
        %v231 = vld [vmem:[#allocation5 + $0x20] sm:$0xf]
        %v232 = vld [vmem:[#allocation5 + $0x24] sm:$0xf]
        %v233 = vld [vmem:[#allocation5 + $0x28] sm:$0xf]
        %v234 = vld [vmem:[#allocation5 + $0x2c] sm:$0xf]
        %v235 = vld [vmem:[#allocation5 + $0x30] sm:$0xf]
        %v236 = vld [vmem:[#allocation5 + $0x34] sm:$0xf]
        %v237 = vld [vmem:[#allocation5 + $0x38] sm:$0xf]
        %v238 = vld [vmem:[#allocation5 + $0x3c] sm:$0xf]
        %v239 = vld [vmem:[%s2] sm:$0x1]
        %v241 = vlaneseq
        %v242 = vshrl.u32 %v241, 7
        %v243 = vsub.s32 0, %v242
        %v244 = vrot.slane %v239, %v243
        %v262 = vunpack.c.l.b16 %v207
        %v263 = vunpack.c.l.b16 %v208
        %v264 = vunpack.c.l.b16 %v209
        %v265 = vunpack.c.l.b16 %v210
        %v266 = vunpack.c.l.b16 %v211
        %v267 = vunpack.c.l.b16 %v212
        %v268 = vunpack.c.l.b16 %v213
        %v269 = vunpack.c.l.b16 %v214
        %v270 = vunpack.c.l.b16 %v215
        %v271 = vunpack.c.l.b16 %v216
        %v272 = vunpack.c.l.b16 %v217
        %v273 = vunpack.c.l.b16 %v218
        %v274 = vunpack.c.l.b16 %v219
        %v275 = vunpack.c.l.b16 %v220
        %v276 = vunpack.c.l.b16 %v221
        %v277 = vunpack.c.l.b16 %v222
        %v278 = vpack.c.b16 %v263, %v262
        %v279 = vpack.c.b16 %v265, %v264
        %v280 = vpack.c.b16 %v267, %v266
        %v281 = vpack.c.b16 %v269, %v268
        %v282 = vpack.c.b16 %v271, %v270
        %v283 = vpack.c.b16 %v273, %v272
        %v284 = vpack.c.b16 %v275, %v274
        %v285 = vpack.c.b16 %v277, %v276
        %v310 = vunpack.c.l.b16 %v223
        %v311 = vunpack.c.l.b16 %v224
        %v312 = vunpack.c.l.b16 %v225
        %v313 = vunpack.c.l.b16 %v226
        %v314 = vunpack.c.l.b16 %v227
        %v315 = vunpack.c.l.b16 %v228
        %v316 = vunpack.c.l.b16 %v229
        %v317 = vunpack.c.l.b16 %v230
        %v318 = vunpack.c.l.b16 %v231
        %v319 = vunpack.c.l.b16 %v232
        %v320 = vunpack.c.l.b16 %v233
        %v321 = vunpack.c.l.b16 %v234
        %v322 = vunpack.c.l.b16 %v235
        %v323 = vunpack.c.l.b16 %v236
        %v324 = vunpack.c.l.b16 %v237
        %v325 = vunpack.c.l.b16 %v238
        %v326 = vpack.c.b16 %v311, %v310
        %v327 = vpack.c.b16 %v313, %v312
        %v328 = vpack.c.b16 %v315, %v314
        %v329 = vpack.c.b16 %v317, %v316
        %v330 = vpack.c.b16 %v319, %v318
        %v331 = vpack.c.b16 %v321, %v320
        %v332 = vpack.c.b16 %v323, %v322
        %v333 = vpack.c.b16 %v325, %v324
        %342 = vmatprep.subr.bf16.mxu0 0
        %343 = vmatpush1.bf16.msra.mxu0 %v333
        %344 = vmatprep.subr.bf16.mxu0 0
        %345 = vmatpush1.bf16.msra.mxu0 %v332
        %346 = vmatprep.subr.bf16.mxu0 0
        %347 = vmatpush1.bf16.msra.mxu0 %v331
        %348 = vmatprep.subr.bf16.mxu0 0
        %349 = vmatpush1.bf16.msra.mxu0 %v330
        %350 = vmatprep.subr.bf16.mxu0 0
        %351 = vmatpush1.bf16.msra.mxu0 %v329
        %352 = vmatprep.subr.bf16.mxu0 0
        %353 = vmatpush1.bf16.msra.mxu0 %v328
        %354 = vmatprep.subr.bf16.mxu0 0
        %355 = vmatpush1.bf16.msra.mxu0 %v327
        %356 = vmatprep.subr.bf16.mxu0 0
        %357 = vmatpush1.bf16.msra.mxu0 %v326
        %358 = vmatprep.subr.bf16.mxu0 0
        %359 = vmatpush2.bf16.msra.mxu0 0
        %360 = vmatprep.subr.bf16.mxu0 0
        %361 = vmatpush2.bf16.msra.mxu0 0
        %362 = vmatprep.subr.bf16.mxu0 0
        %363 = vmatpush2.bf16.msra.mxu0 0
        %364 = vmatprep.subr.bf16.mxu0 0
        %365 = vmatpush2.bf16.msra.mxu0 0
        %366 = vmatprep.subr.bf16.mxu0 0
        %367 = vmatpush2.bf16.msra.mxu0 0
        %368 = vmatprep.subr.bf16.mxu0 0
        %369 = vmatpush2.bf16.msra.mxu0 0
        %370 = vmatprep.subr.bf16.mxu0 0
        %371 = vmatpush2.bf16.msra.mxu0 0
        %372 = vmatprep.subr.bf16.mxu0 0
        %373 = vmatpush2.bf16.msra.mxu0 0
        %374 = vmatprep.mubr.bf16.mxu0 0
        %375 = vmatmul.mubr.bf16.gmra.mxu0 %v278
        %v376 = vpop.f32.mrf.mxu0
        %v377 = vadd.f32 %v244, %v376
        %v378 = vpop.f32.mrf.mxu0
        %v379 = vpop.f32.mrf.mxu0
        %v380 = vadd.f32 %v244, %v379
        %v381 = vpop.f32.mrf.mxu0
        %382 = vmatprep.mubr.bf16.mxu0 0
        %383 = vmatmul.mubr.bf16.gmra.mxu0 %v279
        %v384 = vpop.f32.mrf.mxu0
        %v385 = vadd.f32 %v244, %v384
        %v386 = vpop.f32.mrf.mxu0
        %v387 = vpop.f32.mrf.mxu0
        %v388 = vadd.f32 %v244, %v387
        %v389 = vpop.f32.mrf.mxu0
        %390 = vmatprep.mubr.bf16.mxu0 0
        %391 = vmatmul.mubr.bf16.gmra.mxu0 %v280
        %v392 = vpop.f32.mrf.mxu0
        %v393 = vadd.f32 %v244, %v392
        %v394 = vpop.f32.mrf.mxu0
        %v395 = vpop.f32.mrf.mxu0
        %v396 = vadd.f32 %v244, %v395
        %v397 = vpop.f32.mrf.mxu0
        %398 = vmatprep.mubr.bf16.mxu0 0
        %399 = vmatmul.mubr.bf16.gmra.mxu0 %v281
        %v400 = vpop.f32.mrf.mxu0
        %v401 = vadd.f32 %v244, %v400
        %v402 = vpop.f32.mrf.mxu0
        %v403 = vpop.f32.mrf.mxu0
        %v404 = vadd.f32 %v244, %v403
        %v405 = vpop.f32.mrf.mxu0
        %406 = vmatprep.mubr.bf16.mxu0 0
        %407 = vmatmul.mubr.bf16.gmra.mxu0 %v282
        %v408 = vpop.f32.mrf.mxu0
        %v409 = vadd.f32 %v244, %v408
        %v410 = vpop.f32.mrf.mxu0
        %v411 = vpop.f32.mrf.mxu0
        %v412 = vadd.f32 %v244, %v411
        %v413 = vpop.f32.mrf.mxu0
        %414 = vmatprep.mubr.bf16.mxu0 0
        %415 = vmatmul.mubr.bf16.gmra.mxu0 %v283
        %v416 = vpop.f32.mrf.mxu0
        %v417 = vadd.f32 %v244, %v416
        %v418 = vpop.f32.mrf.mxu0
        %v419 = vpop.f32.mrf.mxu0
        %v420 = vadd.f32 %v244, %v419
        %v421 = vpop.f32.mrf.mxu0
        %422 = vmatprep.mubr.bf16.mxu0 0
        %423 = vmatmul.mubr.bf16.gmra.mxu0 %v284
        %v424 = vpop.f32.mrf.mxu0
        %v425 = vadd.f32 %v244, %v424
        %v426 = vpop.f32.mrf.mxu0
        %v427 = vpop.f32.mrf.mxu0
        %v428 = vadd.f32 %v244, %v427
        %v429 = vpop.f32.mrf.mxu0
        %430 = vmatprep.mubr.bf16.mxu0 0
        %431 = vmatmul.mubr.bf16.gmra.mxu0 %v285
        %v432 = vpop.f32.mrf.mxu0
        %v433 = vadd.f32 %v244, %v432
        %v434 = vpop.f32.mrf.mxu0
        %v435 = vpop.f32.mrf.mxu0
        %v436 = vadd.f32 %v244, %v435
        %v437 = vpop.f32.mrf.mxu0
        %438 = vdwg.mxu0
        %v439 = vmul.f32 %v377, %v377
        %v440 = vmul.f32 %v380, %v380
        %v441 = vmul.f32 %v385, %v385
        %v442 = vmul.f32 %v388, %v388
        %v443 = vmul.f32 %v393, %v393
        %v444 = vmul.f32 %v396, %v396
        %v445 = vmul.f32 %v401, %v401
        %v446 = vmul.f32 %v404, %v404
        %v447 = vmul.f32 %v409, %v409
        %v448 = vmul.f32 %v412, %v412
        %v449 = vmul.f32 %v417, %v417
        %v450 = vmul.f32 %v420, %v420
        %v451 = vmul.f32 %v425, %v425
        %v452 = vmul.f32 %v428, %v428
        %v453 = vmul.f32 %v433, %v433
        %v454 = vmul.f32 %v436, %v436
        %455 = vadd.xlane.f32.xlu0 %v439
        %v456 = vpop.xlane.xlu0 %455
        %457 = vadd.xlane.f32.xlu0 %v440
        %v458 = vpop.xlane.xlu0 %457
        %459 = vadd.xlane.f32.xlu0 %v441
        %v460 = vpop.xlane.xlu0 %459
        %461 = vadd.xlane.f32.xlu0 %v442
        %v462 = vpop.xlane.xlu0 %461
        %463 = vadd.xlane.f32.xlu0 %v443
        %v464 = vpop.xlane.xlu0 %463
        %465 = vadd.xlane.f32.xlu0 %v444
        %v466 = vpop.xlane.xlu0 %465
        %467 = vadd.xlane.f32.xlu0 %v445
        %v468 = vpop.xlane.xlu0 %467
        %469 = vadd.xlane.f32.xlu0 %v446
        %v470 = vpop.xlane.xlu0 %469
        %471 = vadd.xlane.f32.xlu0 %v447
        %v472 = vpop.xlane.xlu0 %471
        %473 = vadd.xlane.f32.xlu0 %v448
        %v474 = vpop.xlane.xlu0 %473
        %475 = vadd.xlane.f32.xlu0 %v449
        %v476 = vpop.xlane.xlu0 %475
        %477 = vadd.xlane.f32.xlu0 %v450
        %v478 = vpop.xlane.xlu0 %477
        %479 = vadd.xlane.f32.xlu0 %v451
        %v480 = vpop.xlane.xlu0 %479
        %481 = vadd.xlane.f32.xlu0 %v452
        %v482 = vpop.xlane.xlu0 %481
        %483 = vadd.xlane.f32.xlu0 %v453
        %v484 = vpop.xlane.xlu0 %483
        %485 = vadd.xlane.f32.xlu0 %v454
        %v486 = vpop.xlane.xlu0 %485
        %v487 = vmax.f32 %v456, 1e-24
        %v488 = vmax.f32 %v458, 1e-24
        %v489 = vmax.f32 %v460, 1e-24
        %v490 = vmax.f32 %v462, 1e-24
        %v491 = vmax.f32 %v464, 1e-24
        %v492 = vmax.f32 %v466, 1e-24
        %v493 = vmax.f32 %v468, 1e-24
        %v494 = vmax.f32 %v470, 1e-24
        %v495 = vmax.f32 %v472, 1e-24
        %v496 = vmax.f32 %v474, 1e-24
        %v497 = vmax.f32 %v476, 1e-24
        %v498 = vmax.f32 %v478, 1e-24
        %v499 = vmax.f32 %v480, 1e-24
        %v500 = vmax.f32 %v482, 1e-24
        %v501 = vmax.f32 %v484, 1e-24
        %v502 = vmax.f32 %v486, 1e-24
        %v503 = vrsqrt.pop %v487
        %v504 = vrsqrt.pop %v488
        %v505 = vrsqrt.pop %v489
        %v506 = vrsqrt.pop %v490
        %v507 = vrsqrt.pop %v491
        %v508 = vrsqrt.pop %v492
        %v509 = vrsqrt.pop %v493
        %v510 = vrsqrt.pop %v494
        %v511 = vrsqrt.pop %v495
        %v512 = vrsqrt.pop %v496
        %v513 = vrsqrt.pop %v497
        %v514 = vrsqrt.pop %v498
        %v515 = vrsqrt.pop %v499
        %v516 = vrsqrt.pop %v500
        %v517 = vrsqrt.pop %v501
        %v518 = vrsqrt.pop %v502
        %v519 = vmul.f32 %v503, 1.8
        %v520 = vmul.f32 %v504, 1.8
        %v521 = vmul.f32 %v505, 1.8
        %v522 = vmul.f32 %v506, 1.8
        %v523 = vmul.f32 %v507, 1.8
        %v524 = vmul.f32 %v508, 1.8
        %v525 = vmul.f32 %v509, 1.8
        %v526 = vmul.f32 %v510, 1.8
        %v527 = vmul.f32 %v511, 1.8
        %v528 = vmul.f32 %v512, 1.8
        %v529 = vmul.f32 %v513, 1.8
        %v530 = vmul.f32 %v514, 1.8
        %v531 = vmul.f32 %v515, 1.8
        %v532 = vmul.f32 %v516, 1.8
        %v533 = vmul.f32 %v517, 1.8
        %v534 = vmul.f32 %v518, 1.8
        %v535 = vmul.f32 %v377, %v519
        %v536 = vmul.f32 %v380, %v520
        %v537 = vmul.f32 %v385, %v521
        %v538 = vmul.f32 %v388, %v522
        %v539 = vmul.f32 %v393, %v523
        %v540 = vmul.f32 %v396, %v524
        %v541 = vmul.f32 %v401, %v525
        %v542 = vmul.f32 %v404, %v526
        %v543 = vmul.f32 %v409, %v527
        %v544 = vmul.f32 %v412, %v528
        %v545 = vmul.f32 %v417, %v529
        %v546 = vmul.f32 %v420, %v530
        %v547 = vmul.f32 %v425, %v531
        %v548 = vmul.f32 %v428, %v532
        %v549 = vmul.f32 %v433, %v533
        %v550 = vmul.f32 %v436, %v534
        %v551 = vpack.c.bf16 %v536, %v535
        %v552 = vpack.c.bf16 %v538, %v537
        %v553 = vpack.c.bf16 %v540, %v539
        %v554 = vpack.c.bf16 %v542, %v541
        %v555 = vpack.c.bf16 %v544, %v543
        %v556 = vpack.c.bf16 %v546, %v545
        %v557 = vpack.c.bf16 %v548, %v547
        %v558 = vpack.c.bf16 %v550, %v549
        %v567 = vunpack.c.l.b16 %v551
        %v568 = vunpack.c.h.b16 %v551
        %v569 = vunpack.c.l.b16 %v552
        %v570 = vunpack.c.h.b16 %v552
        %v571 = vunpack.c.l.b16 %v553
        %v572 = vunpack.c.h.b16 %v553
        %v573 = vunpack.c.l.b16 %v554
        %v574 = vunpack.c.h.b16 %v554
        %v575 = vunpack.c.l.b16 %v555
        %v576 = vunpack.c.h.b16 %v555
        %v577 = vunpack.c.l.b16 %v556
        %v578 = vunpack.c.h.b16 %v556
        %v579 = vunpack.c.l.b16 %v557
        %v580 = vunpack.c.h.b16 %v557
        %v581 = vunpack.c.l.b16 %v558
        %v582 = vunpack.c.h.b16 %v558
        %v583 = vpack.c.b16 %v567, %v567
        %v584 = vpack.c.b16 %v568, %v568
        %v585 = vpack.c.b16 %v569, %v569
        %v586 = vpack.c.b16 %v570, %v570
        %v587 = vpack.c.b16 %v571, %v571
        %v588 = vpack.c.b16 %v572, %v572
        %v589 = vpack.c.b16 %v573, %v573
        %v590 = vpack.c.b16 %v574, %v574
        %v591 = vpack.c.b16 %v575, %v575
        %v592 = vpack.c.b16 %v576, %v576
        %v593 = vpack.c.b16 %v577, %v577
        %v594 = vpack.c.b16 %v578, %v578
        %v595 = vpack.c.b16 %v579, %v579
        %v596 = vpack.c.b16 %v580, %v580
        %v597 = vpack.c.b16 %v581, %v581
        %v598 = vpack.c.b16 %v582, %v582
        %615 = vst [vmem:[%s203] sm:$0xf] %v583
        %616 = vst [vmem:[%s203 + $0x4] sm:$0xf] %v584
        %617 = vst [vmem:[%s203 + $0x8] sm:$0xf] %v585
        %618 = vst [vmem:[%s203 + $0xc] sm:$0xf] %v586
        %619 = vst [vmem:[%s203 + $0x10] sm:$0xf] %v587
        %620 = vst [vmem:[%s203 + $0x14] sm:$0xf] %v588
        %621 = vst [vmem:[%s203 + $0x18] sm:$0xf] %v589
        %622 = vst [vmem:[%s203 + $0x1c] sm:$0xf] %v590
        %623 = vst [vmem:[%s203 + $0x20] sm:$0xf] %v591
        %624 = vst [vmem:[%s203 + $0x24] sm:$0xf] %v592
        %625 = vst [vmem:[%s203 + $0x28] sm:$0xf] %v593
        %626 = vst [vmem:[%s203 + $0x2c] sm:$0xf] %v594
        %627 = vst [vmem:[%s203 + $0x30] sm:$0xf] %v595
        %628 = vst [vmem:[%s203 + $0x34] sm:$0xf] %v596
        %629 = vst [vmem:[%s203 + $0x38] sm:$0xf] %v597
        %630 = vst [vmem:[%s203 + $0x3c] sm:$0xf] %v598
        %s631 = sand.u32 %s97, 1
        %s632 = scalar_lea.sflag [#allocation4], %s631
        %s633 = sand.u32 %s97, 1
        %s634 = smul.addr %s633, 64
        %s635 = scalar_lea.vmem [#allocation7], %s634
        // Predicated region
        $region41: #{tpu_custom_call.1} parent=31 // pred_check
          %p636 = pneg %p107
        $region42: #{tpu_custom_call.1} parent=31 // pred_check_branch
          %638 = sbr.rel (%p636) target = $region44
        $region43: #{tpu_custom_call.1} parent=31 // pred_region
          %s639 = smul.u32 16, %s21
          %s641 = ssub.s32 1024, 1024
          %642 = vsyncadd %s632, %s641
          %s643 = smul.addr %s639, 64
          %s644 = scalar_lea.hbm %s3, %s643
          %s645 = sshll.u32 %s635, 4
          %s646 = int_to_ptr.vmem [resolvable:$true] %s645
          %651 = dma.vmem_to_hbm [thread:$0]  %s646, 1024, %s644, %s632, 64, 64, 4
        $region44: #{tpu_custom_call.1} parent=31 // pred_fallthru
          _
      $region32: #{tpu_custom_call.1} parent=5 // pred_fallthru
        _
      %p652 = scmp.le.s32.totalorder 2, %s16
      // Predicated region
      $region45: #{tpu_custom_call.1} parent=5 // pred_check
        %p653 = pneg %p652
      $region46: #{tpu_custom_call.1} parent=5 // pred_check_branch
        %655 = sbr.rel (%p653) target = $region48
      $region47: #{tpu_custom_call.1} parent=5 // pred_region
        %s656 = ssub.s32 %s16, 2
        // Predicated region
        $region49: #{tpu_custom_call.1} parent=47 // pred_check
          %p657 = pneg %p113
        $region50: #{tpu_custom_call.1} parent=47 // pred_check_branch
          %659 = sbr.rel (%p657) target = $region52
        $region51: #{tpu_custom_call.1} parent=47 // pred_region
          %s660 = sand.u32 %s98, 1
          %s661 = scalar_lea.sflag [#allocation4], %s660
          %s662 = sand.u32 %s98, 1
          %s663 = smul.addr %s662, 64
          %s664 = scalar_lea.vmem [#allocation7], %s663
          %665 = dma.done %s661, 1024
        $region52: #{tpu_custom_call.1} parent=47 // pred_fallthru
          _
      $region48: #{tpu_custom_call.1} parent=5 // pred_fallthru
        _
    $region6: #{tpu_custom_call.1} parent=1 // loop_footer
      %s20 = sadd.s32 1, %s16
    $region7: #{tpu_custom_call.1} parent=1 // loop_footer_branch
      %15 = sbr.rel target = $region3
    $region8: #{tpu_custom_call.1} parent=1 // loop_exit
      _
    %666 = vsyncpa [#allocation3], 1
    %s667 = scalar_lea.sflag [#allocation3], 1
    %668 = vsyncpa %s667, 1
    %669 = vsyncpa [#allocation6], 1
    %670 = vsyncpa [#allocation4], 1
    %s671 = scalar_lea.sflag [#allocation4], 1
    %672 = vsyncpa %s671, 1

</llo_original>
